<compile_context>
chip_gen: v5e
topology: v5e:2x2
jax: 0.10.0
libtpu: 0.0.40
codegen_flags: <defaults>
</compile_context>

<pallas_src>
import jax
import jax.numpy as jnp
from jax import lax
from jax.experimental import pallas as pl
from jax.experimental.pallas import tpu as pltpu


# ----------------------------------------------------------------------------
# Hardware queries (deliberately uncached: conservative fallback is v7x-safe)
# ----------------------------------------------------------------------------
def _tpu_info():
    try:
        return pltpu.get_tpu_info()
    except Exception:
        return None


def _vmem_capacity_bytes():
    info = _tpu_info()
    cap = getattr(info, "vmem_capacity_bytes", None) if info is not None else None
    try:
        cap = int(cap) if cap else None
    except Exception:
        cap = None
    # Conservative default (v7x per-TensorCore VMEM) if the query fails.
    return cap if cap else 64 * 1024 * 1024


def _num_tensorcores():
    info = _tpu_info()
    if info is not None:
        for name in ("num_cores", "core_count", "num_tensorcores",
                     "tensorcore_count"):
            v = getattr(info, name, None)
            try:
                if v and int(v) > 0:
                    return int(v)
            except Exception:
                pass
    # Heuristic: 64 MiB/TC parts (v7x) have 2 TensorCores per chip.
    return 2 if _vmem_capacity_bytes() <= 64 * 1024 * 1024 else 1


def _vmem_limit_bytes():
    # ~0.6x physical leaves headroom for double buffers + Mosaic scratch
    # (v5e/v6e: ~76 MiB of 128 MiB; v7x: ~38 MiB of 64 MiB).
    return min(_vmem_capacity_bytes() * 3 // 5, 96 * 1024 * 1024)


def _tile_budget_bytes():
    return min(_vmem_limit_bytes() // 3, 24 * 1024 * 1024)


def _round_up(x, m):
    return -(-x // m) * m


def _pow2_floor(x):
    p = 16
    while p * 2 <= x:
        p *= 2
    return p


def _choose_tile(candidate, total, cap):
    if total <= 16:
        return total
    # Keep >= 2 grid steps only on multi-TensorCore chips (v7x): the 'parallel'
    # grid axis is sharded across cores there.  On single-TC v5e/v6e the grid
    # is a serial loop, so bigger tiles are strictly better.
    limit = total if _num_tensorcores() <= 1 else max(total // 2, 16)
    return _pow2_floor(max(16, min(candidate, cap, limit)))


# ----------------------------------------------------------------------------
# Pallas kernels
# ----------------------------------------------------------------------------
def _make_row_mlp_kernel(n_layers):
    """Row-wise shared MLP (1x1 conv + folded-BN + ReLU stack).
    bf16 storage / MXU operands, f32 accumulation and bias+ReLU math."""

    def kernel(x_ref, *refs):
        o_ref = refs[-1]
        h = x_ref[...]                                     # (tm, cin) bf16
        for l in range(n_layers):
            w = refs[2 * l][...]                           # (cin_l, cout_l) bf16
            b = refs[2 * l + 1][...]                       # (1, cout_l) f32
            f = jnp.maximum(
                jnp.dot(h, w, preferred_element_type=jnp.float32) + b, 0.0)
            h = f.astype(jnp.bfloat16)
        o_ref[...] = h

    return kernel


def _make_group_mlp_max_kernel(n_layers, nsample):
    """Shared MLP over tg*nsample neighbour rows with
      (a) the ball-centering subtraction folded into layer 0 as a per-group
          correction matmul: (x - [c, 0]) @ W == x @ W - c @ W[:3],
      (b) the max-pool over the nsample axis fused in.
    Writes only (tg, cout)."""

    def kernel(x_ref, nxyz_ref, *refs):
        o_ref = refs[-1]
        h = x_ref[...]                                     # (tg*ns, cin) bf16
        rows = h.shape[0]
        tg = rows // nsample
        f = None
        for l in range(n_layers):
            w = refs[2 * l][...]
            b = refs[2 * l + 1][...]
            acc = jnp.dot(h, w, preferred_element_type=jnp.float32)
            if l == 0:
                corr = jnp.dot(nxyz_ref[...].astype(jnp.bfloat16), w[:3, :],
                               preferred_element_type=jnp.float32)  # (tg, c0)
                acc = (acc.reshape(tg, nsample, -1) - corr[:, None, :]
                       ).reshape(rows, -1)
            f = jnp.maximum(acc + b, 0.0)                  # f32
            h = f.astype(jnp.bfloat16)
        cout = f.shape[-1]
        o_ref[...] = jnp.max(f.reshape(tg, nsample, cout), axis=1
                             ).astype(o_ref.dtype)

    return kernel


# ----------------------------------------------------------------------------
# Wrappers
# ----------------------------------------------------------------------------
def _mlp_args_specs(params):
    args, specs = [], []
    for w, b in params:
        args.append(w)
        specs.append(pl.BlockSpec(w.shape, lambda i: (0, 0)))
        args.append(b.reshape(1, -1))
        specs.append(pl.BlockSpec((1, b.shape[-1]), lambda i: (0, 0)))
    return args, specs


def _pad_last_layer_lane_dense(params):
    """Zero-pad the final layer's output channels to a multiple of 128 so the
    kernel's output stores are lane-dense (unmasked vst)."""
    w, b = params[-1]
    cout = w.shape[1]
    cout_pad = max(128, _round_up(cout, 128))
    if cout_pad == cout:
        return params, cout, cout
    w = jnp.pad(w, ((0, 0), (0, cout_pad - cout)))
    b = jnp.pad(b, ((0, cout_pad - cout),))
    return params[:-1] + [(w, b)], cout, cout_pad


def _live_pair_bytes(cin, widths):
    # At layer l only (h_in bf16, acc f32, h_out bf16) are live.
    return max(2 * a + 6 * b for a, b in zip([cin] + list(widths[:-1]), widths))


def _weight_bytes(params):
    return sum(w.size * w.dtype.itemsize + 4 * b.size for w, b in params)


def mlp_rows(x, params, *, tile_cap=2048):
    """Shared MLP applied row-wise: (R, c_in) -> (R, c_out) bf16."""
    R, cin = x.shape
    x = x.astype(jnp.bfloat16)
    params, cout, cout_pad = _pad_last_layer_lane_dense(params)
    widths = [w.shape[1] for w, _ in params]
    per_row = 2 * 2 * cin + _live_pair_bytes(cin, widths) + 2 * 2 * cout_pad
    budget = max(_tile_budget_bytes() - _weight_bytes(params), 1 << 20)
    tm = _choose_tile(budget // max(per_row, 1), R, tile_cap)
    Rp = _round_up(R, tm)
    if Rp != R:
        x = jnp.pad(x, ((0, Rp - R), (0, 0)))
    p_args, p_specs = _mlp_args_specs(params)
    out = pl.pallas_call(
        _make_row_mlp_kernel(len(params)),
        out_shape=jax.ShapeDtypeStruct((Rp, cout_pad), jnp.bfloat16),
        grid=(Rp // tm,),
        in_specs=[pl.BlockSpec((tm, cin), lambda i: (i, 0))] + p_specs,
        out_specs=pl.BlockSpec((tm, cout_pad), lambda i: (i, 0)),
        compiler_params=pltpu.CompilerParams(
            dimension_semantics=("parallel",),
            vmem_limit_bytes=_vmem_limit_bytes()),
    )(x, *p_args)
    return out[:R, :cout]


def sa_mlp_maxpool(grouped, new_xyz, params, *, tile_cap=512):
    """Fused centering + shared-MLP + max-pool over the ball axis.

    grouped: (M, nsample, c_in) UNCENTERED [xyz | feat] rows (bf16)
    new_xyz: (M, 3) ball centers (f32)
    -> (M, c_out) bf16
    """
    M, ns, cin = grouped.shape
    grouped = grouped.astype(jnp.bfloat16)
    new_xyz = new_xyz.astype(jnp.float32)
    params, cout, cout_pad = _pad_last_layer_lane_dense(params)
    widths = [w.shape[1] for w, _ in params]
    per_group = (ns * (2 * 2 * cin + _live_pair_bytes(cin, widths))
                 + 2 * 2 * cout_pad + 2 * 4 * 3)
    budget = max(_tile_budget_bytes() - _weight_bytes(params), 1 << 20)
    tg = _choose_tile(budget // max(per_group, 1), M, tile_cap)
    Mp = _round_up(M, tg)
    if Mp != M:
        grouped = jnp.pad(grouped, ((0, Mp - M), (0, 0), (0, 0)))
        new_xyz = jnp.pad(new_xyz, ((0, Mp - M), (0, 0)))
    rows = grouped.reshape(Mp * ns, cin)
    p_args, p_specs = _mlp_args_specs(params)
    out = pl.pallas_call(
        _make_group_mlp_max_kernel(len(params), ns),
        out_shape=jax.ShapeDtypeStruct((Mp, cout_pad), jnp.bfloat16),
        grid=(Mp // tg,),
        in_specs=[pl.BlockSpec((tg * ns, cin), lambda i: (i, 0)),
                  pl.BlockSpec((tg, 3), lambda i: (i, 0))] + p_specs,
        out_specs=pl.BlockSpec((tg, cout_pad), lambda i: (i, 0)),
        compiler_params=pltpu.CompilerParams(
            dimension_semantics=("parallel",),
            vmem_limit_bytes=_vmem_limit_bytes()),
    )(rows, new_xyz, *p_args)
    return out[:M, :cout]


# ----------------------------------------------------------------------------
# Plain-JAX glue: sampling / grouping / interpolation
# ----------------------------------------------------------------------------
def batched_index(points, idx):
    """points: (B, N, C); idx: (B, ...) int -> gathered per batch."""
    return jax.vmap(lambda p, i: p[i])(points, idx)


def furthest_point_sample(xyz, npoint):
    """xyz: (B, N, 3) f32 -> (B, npoint) int32 indices (same algorithm as CUDA FPS)."""
    # TODO(synk): inherently sequential (npoint-1 dependent iterations); kept as
    # a lax.fori_loop in plain JAX rather than a Pallas kernel.
    B, N, _ = xyz.shape

    def body(i, state):
        idxs, mind, last = state
        last_xyz = batched_index(xyz, last)                       # (B, 3)
        d = jnp.sum((xyz - last_xyz[:, None, :]) ** 2, axis=-1)   # (B, N)
        mind = jnp.minimum(mind, d)
        nxt = jnp.argmax(mind, axis=-1).astype(jnp.int32)
        idxs = idxs.at[:, i].set(nxt)
        return idxs, mind, nxt

    idxs = jnp.zeros((B, npoint), dtype=jnp.int32)
    mind = jnp.full((B, N), 1e10, dtype=jnp.float32)
    last = jnp.zeros((B,), dtype=jnp.int32)
    idxs, _, _ = lax.fori_loop(1, npoint, body, (idxs, mind, last))
    return idxs


def ball_query(radius, nsample, xyz, new_xyz):
    """(B, S, nsample) int32; pads with the first in-ball point, or index 0
    when the ball is empty (matches the CUDA reference)."""
    N = xyz.shape[1]
    d2 = jnp.sum((new_xyz[:, :, None, :] - xyz[:, None, :, :]) ** 2, axis=-1)
    within = d2 < (radius * radius)
    key = jnp.where(within, jnp.arange(N, dtype=jnp.int32), jnp.int32(N))
    smallest = -lax.top_k(-key, nsample)[0]           # first nsample in-ball idx
    first = smallest[..., :1]
    idx = jnp.where(smallest >= N, first, smallest)   # pad with first in-ball
    idx = jnp.where(idx >= N, 0, idx)                 # empty ball -> index 0
    return idx.astype(jnp.int32)


def three_nn(unknown, known):
    d2 = jnp.sum((unknown[:, :, None, :] - known[:, None, :, :]) ** 2, axis=-1)
    neg_vals, idx = lax.top_k(-d2, 3)
    return jnp.sqrt(jnp.maximum(-neg_vals, 0.0)), idx


def three_interpolate(known_feats, idx, weight):
    gathered = batched_index(known_feats, idx)            # (B, n, 3, C)
    return jnp.sum(gathered * weight[..., None], axis=2)  # f32


# ----------------------------------------------------------------------------
# PointNet++ modules
# ----------------------------------------------------------------------------
def sa_module_msg(xyz, features, npoint, radii, nsamples, scale_params,
                  use_xyz=True):
    B = xyz.shape[0]
    fps_idx = furthest_point_sample(xyz, npoint)
    new_xyz = batched_index(xyz, fps_idx)                  # (B, npoint, 3) f32

    if features is not None:
        if use_xyz:
            src_all = jnp.concatenate(
                [xyz.astype(jnp.bfloat16), features.astype(jnp.bfloat16)],
                axis=-1)                                   # (B, N, 3+C) bf16
        else:
            src_all = features.astype(jnp.bfloat16)
    else:
        src_all = xyz.astype(jnp.bfloat16)

    nxyz_flat = new_xyz.reshape(B * npoint, 3)
    scale_feats = []
    for radius, nsample, params in zip(radii, nsamples, scale_params):
        idx = ball_query(radius, nsample, xyz, new_xyz)    # (B, npoint, ns)
        # TODO(synk): fuse this gather into the Pallas kernel (scalar-prefetched
        # indices + per-batch source block in VMEM) to remove the grouped
        # tensor's HBM round-trip.
        grouped = batched_index(src_all, idx)              # (B, npoint, ns, cin) bf16
        M = B * npoint
        cin = grouped.shape[-1]
        h = sa_mlp_maxpool(grouped.reshape(M, nsample, cin), nxyz_flat, params)
        scale_feats.append(h.reshape(B, npoint, -1))
    return new_xyz, jnp.concatenate(scale_feats, axis=-1)  # bf16 features


def fp_module(unknown, known, unknown_feats, known_feats, params):
    dist, idx = three_nn(unknown, known)
    dist_recip = 1.0 / (dist + 1e-8)
    norm = jnp.sum(dist_recip, axis=2, keepdims=True)
    weight = dist_recip / norm
    interpolated = three_interpolate(known_feats, idx, weight)      # f32
    interpolated = interpolated.astype(jnp.bfloat16)
    if unknown_feats is not None:
        new_features = jnp.concatenate(
            [interpolated, unknown_feats.astype(jnp.bfloat16)], axis=-1)
    else:
        new_features = interpolated
    B, n, C = new_features.shape
    out = mlp_rows(new_features.reshape(B * n, C), params)           # Pallas MLP
    return out.reshape(B, n, -1)


# ----------------------------------------------------------------------------
# Parameters (deterministic, synthetic; BatchNorm folded in eval mode).
# Inner layer widths are zero-padded to multiples of 128 lanes (exact no-op).
# ----------------------------------------------------------------------------
def _fold_bn_linear(key, cin, cout):
    kw, kg = jax.random.split(key)
    w = jax.random.normal(kw, (cin, cout), jnp.float32) / jnp.sqrt(float(cin))
    gamma = 1.0 + 0.1 * jax.random.normal(kg, (cout,), jnp.float32)
    beta = 0.01 * jnp.arange(cout, dtype=jnp.float32)
    # eval-mode BN with running_mean=0, running_var=1, eps=1e-5, folded into W/b
    scale = gamma / jnp.sqrt(1.0 + 1e-5)
    w = (w * scale[None, :]).astype(jnp.bfloat16)   # bf16 weights for the MXU
    return w, beta                                  # bias kept in f32


def make_mlp_params(key, dims):
    dims = list(dims)
    n_layers = len(dims) - 1
    # Padded output width per layer: inner layers rounded up to 128 lanes; the
    # last layer stays logical (the wrapper lane-pads it and slices back).
    pout = [(_round_up(dims[i + 1], 128) if i < n_layers - 1 else dims[i + 1])
            for i in range(n_layers)]
    pin = [dims[0]] + pout[:-1]
    params = []
    for i in range(n_layers):
        w, b = _fold_bn_linear(jax.random.fold_in(key, i), dims[i], dims[i + 1])
        wp = jnp.zeros((pin[i], pout[i]), jnp.bfloat16)
        wp = wp.at[:dims[i], :dims[i + 1]].set(w)
        bp = jnp.zeros((pout[i],), jnp.float32).at[:dims[i + 1]].set(b)
        params.append((wp, bp))
    return params


def make_backbone_params(key, input_feature_dim, lang_hidden_dim, use_xyz=True):
    def sa_params(k, mlps):
        out = []
        for s, spec in enumerate(mlps):
            dims = list(spec)
            if use_xyz:
                dims[0] += 3
            out.append(make_mlp_params(jax.random.fold_in(k, s), dims))
        return out

    p = {}
    c_in = input_feature_dim
    p["sa1"] = sa_params(jax.random.fold_in(key, 1),
                         [[c_in, 16, 16, 32], [c_in, 32, 32, 64]])
    c_out_0 = 32 + 64
    c_in = c_out_0
    p["sa2"] = sa_params(jax.random.fold_in(key, 2),
                         [[c_in, 64, 64, 128], [c_in, 64, 96, 128]])
    c_out_1 = 128 + 128 + lang_hidden_dim
    c_in = c_out_1
    p["sa3"] = sa_params(jax.random.fold_in(key, 3),
                         [[c_in, 128, 196, 256], [c_in, 128, 196, 256]])
    c_out_2 = 256 + 256
    c_in = c_out_2
    p["sa4"] = sa_params(jax.random.fold_in(key, 4),
                         [[c_in, 256, 256, 512], [c_in, 256, 384, 512]])
    c_out_3 = 512 + 512
    p["fp1"] = make_mlp_params(jax.random.fold_in(key, 5),
                               [c_out_3 + c_out_2, 512, 512])
    p["fp2"] = make_mlp_params(jax.random.fold_in(key, 6),
                               [512 + c_out_1, 512, 512])
    p["fp3"] = make_mlp_params(jax.random.fold_in(key, 7),
                               [512 + c_out_0, 256, 256])
    p["fp4"] = make_mlp_params(jax.random.fold_in(key, 8),
                               [256 + input_feature_dim, 128, 128])
    return p


# ----------------------------------------------------------------------------
# Backbone forward (mirrors PointNet2Backbone.forward)
# ----------------------------------------------------------------------------
def backbone_forward(pc, l_features, params):
    # _break_up_pc
    xyz = pc[..., :3]
    features = pc[..., 3:] if pc.shape[-1] > 3 else None     # (B, N, C_in)

    sa1_xyz, sa1_f = sa_module_msg(xyz, features, 1024, [0.05, 0.1], [16, 32],
                                   params["sa1"])
    sa2_xyz, sa2_f = sa_module_msg(sa1_xyz, sa1_f, 256, [0.1, 0.2], [16, 32],
                                   params["sa2"])

    # language features broadcast over the sa2 points, concat on channel axis
    B, S2, _ = sa2_f.shape
    enc = jnp.broadcast_to(l_features.astype(jnp.bfloat16)[:, None, :],
                           (B, S2, l_features.shape[-1]))
    sa2_f = jnp.concatenate([sa2_f, enc], axis=-1)

    sa3_xyz, sa3_f = sa_module_msg(sa2_xyz, sa2_f, 64, [0.2, 0.4], [16, 32],
                                   params["sa3"])
    sa4_xyz, sa4_f = sa_module_msg(sa3_xyz, sa3_f, 16, [0.4, 0.8], [16, 32],
                                   params["sa4"])

    local = fp_module(sa3_xyz, sa4_xyz, sa3_f, sa4_f, params["fp1"])
    local = fp_module(sa2_xyz, sa3_xyz, sa2_f, local, params["fp2"])
    local = fp_module(sa1_xyz, sa2_xyz, sa1_f, local, params["fp3"])
    local = fp_module(xyz, sa1_xyz, features, local, params["fp4"])

    global_features = sa4_f.astype(jnp.float32)     # (B, 16, 1024) channels-last
    local_features = local.astype(jnp.float32)      # (B, N, 128)   channels-last
    return global_features, local_features


# ----------------------------------------------------------------------------
# Pure-JAX reference for the fused group kernel (same bf16 quantisation points)
# ----------------------------------------------------------------------------
def _sa_group_ref(grouped, new_xyz, params):
    q = lambda a: a.astype(jnp.bfloat16).astype(jnp.float32)
    h = q(grouped)
    h = h.at[:, :, :3].add(-q(new_xyz)[:, None, :])
    M, ns, _ = h.shape
    h = h.reshape(M * ns, -1)
    for w, b in params:
        h = jnp.maximum(jnp.dot(h, q(w)) + b[None, :], 0.0)
        h = q(h)
    cout = h.shape[-1]
    return jnp.max(h.reshape(M, ns, cout), axis=1)


# ----------------------------------------------------------------------------
if __name__ == "__main__":
    B, N = 2, 2048
    input_feature_dim = 3
    lang_hidden_dim = 32

    key = jax.random.PRNGKey(0)
    k_pc, k_l, k_p, k_t = jax.random.split(key, 4)

    # --- small correctness check of the fused group kernel -------------------
    chk_params = make_mlp_params(k_t, [9, 16, 32])
    chk_grouped = jax.random.normal(jax.random.fold_in(k_t, 1), (32, 16, 9),
                                    jnp.float32)
    chk_centers = jax.random.uniform(jax.random.fold_in(k_t, 2), (32, 3),
                                     jnp.float32)
    got = sa_mlp_maxpool(chk_grouped.astype(jnp.bfloat16), chk_centers,
                         chk_params)
    want = _sa_group_ref(chk_grouped, chk_centers, chk_params)
    assert got.shape == want.shape
    assert jnp.allclose(got.astype(jnp.float32), want, rtol=5e-2, atol=5e-2), \
        "fused group-MLP kernel mismatch vs pure-JAX reference"

    # --- full backbone --------------------------------------------------------
    pc = jax.random.uniform(k_pc, (B, N, 3 + input_feature_dim), jnp.float32)
    l_features = jax.random.normal(k_l, (B, lang_hidden_dim), jnp.float32)
    params = make_backbone_params(k_p, input_feature_dim, lang_hidden_dim)

    fwd = jax.jit(backbone_forward)
    global_features, local_features = fwd(pc, l_features, params)
    jax.block_until_ready((global_features, local_features))

    assert global_features.shape == (B, 16, 1024)
    assert local_features.shape == (B, N, 128)
    assert global_features.dtype == jnp.float32
    assert local_features.dtype == jnp.float32

    print("KERNEL_OK")
</pallas_src>

<mosaic_0001>
module attributes {stable_mosaic.version = 11 : i64} {
  func.func @kernel(%arg0: i32, %arg1: memref<256x9xbf16, #tpu.memory_space<vmem>>, %arg2: memref<16x3xf32, #tpu.memory_space<vmem>>, %arg3: memref<9x128xbf16, #tpu.memory_space<vmem>>, %arg4: memref<1x128xf32, #tpu.memory_space<vmem>>, %arg5: memref<128x128xbf16, #tpu.memory_space<vmem>>, %arg6: memref<1x128xf32, #tpu.memory_space<vmem>>, %arg7: memref<16x128xbf16, #tpu.memory_space<vmem>>) attributes {dimension_semantics = [#tpu.dimension_semantics<parallel>], iteration_bounds = array<i64: 2>, scalar_prefetch = 0 : i64, scratch_operands = 0 : i64, tpu.core_type = #tpu.core_type<tc>, window_params = [{transform_indices = @transform_0, window_bounds = array<i64: 256, 9>}, {transform_indices = @transform_1, window_bounds = array<i64: 16, 3>}, {pipeline_mode = #tpu.pipeline_mode<synchronous>, transform_indices = @transform_2, window_bounds = array<i64: 9, 128>}, {pipeline_mode = #tpu.pipeline_mode<synchronous>, transform_indices = @transform_3, window_bounds = array<i64: 1, 128>}, {pipeline_mode = #tpu.pipeline_mode<synchronous>, transform_indices = @transform_4, window_bounds = array<i64: 128, 128>}, {pipeline_mode = #tpu.pipeline_mode<synchronous>, transform_indices = @transform_5, window_bounds = array<i64: 1, 128>}, {transform_indices = @transform_6, window_bounds = array<i64: 16, 128>}]} {
    %c0 = arith.constant 0 : index
    %c0_0 = arith.constant 0 : index
    %0 = vector.load %arg1[%c0, %c0_0] : memref<256x9xbf16, #tpu.memory_space<vmem>>, vector<256x9xbf16>
    %c0_1 = arith.constant 0 : index
    %c0_2 = arith.constant 0 : index
    %1 = vector.load %arg3[%c0_1, %c0_2] : memref<9x128xbf16, #tpu.memory_space<vmem>>, vector<9x128xbf16>
    %c0_3 = arith.constant 0 : index
    %c0_4 = arith.constant 0 : index
    %2 = vector.load %arg4[%c0_3, %c0_4] : memref<1x128xf32, #tpu.memory_space<vmem>>, vector<1x128xf32>
    %cst = arith.constant dense<0.000000e+00> : vector<256x128xf32>
    %3 = tpu.matmul %0, %1, %cst {dimension_numbers = #tpu.dot_dimension_numbers<[1], [0], [0], [1], [0, 0, 1, 1], [], []>} : vector<256x9xbf16>, vector<9x128xbf16>, vector<256x128xf32> -> vector<256x128xf32>
    %c0_5 = arith.constant 0 : index
    %c0_6 = arith.constant 0 : index
    %4 = vector.load %arg2[%c0_5, %c0_6] : memref<16x3xf32, #tpu.memory_space<vmem>>, vector<16x3xf32>
    %5 = arith.truncf %4 : vector<16x3xf32> to vector<16x3xbf16>
    %6 = vector.extract_strided_slice %1 {offsets = [0, 0], sizes = [3, 128], strides = [1, 1]} : vector<9x128xbf16> to vector<3x128xbf16>
    %cst_7 = arith.constant dense<0.000000e+00> : vector<16x128xf32>
    %7 = tpu.matmul %5, %6, %cst_7 {dimension_numbers = #tpu.dot_dimension_numbers<[1], [0], [0], [1], [0, 0, 1, 1], [], []>} : vector<16x3xbf16>, vector<3x128xbf16>, vector<16x128xf32> -> vector<16x128xf32>
    %8 = vector.shape_cast %3 : vector<256x128xf32> to vector<16x16x128xf32>
    %9 = vector.shape_cast %7 : vector<16x128xf32> to vector<16x1x128xf32>
    %10 = vector.broadcast %9 : vector<16x1x128xf32> to vector<16x16x128xf32>
    %11 = arith.subf %8, %10 : vector<16x16x128xf32>
    %12 = vector.shape_cast %11 : vector<16x16x128xf32> to vector<256x128xf32>
    %13 = vector.broadcast %2 : vector<1x128xf32> to vector<256x128xf32>
    %14 = arith.addf %12, %13 : vector<256x128xf32>
    %cst_8 = arith.constant 0.000000e+00 : f32
    %15 = vector.broadcast %cst_8 : f32 to vector<256x128xf32>
    %16 = arith.maximumf %14, %15 : vector<256x128xf32>
    %17 = arith.truncf %16 : vector<256x128xf32> to vector<256x128xbf16>
    %c0_9 = arith.constant 0 : index
    %c0_10 = arith.constant 0 : index
    %18 = vector.load %arg5[%c0_9, %c0_10] : memref<128x128xbf16, #tpu.memory_space<vmem>>, vector<128x128xbf16>
    %c0_11 = arith.constant 0 : index
    %c0_12 = arith.constant 0 : index
    %19 = vector.load %arg6[%c0_11, %c0_12] : memref<1x128xf32, #tpu.memory_space<vmem>>, vector<1x128xf32>
    %cst_13 = arith.constant dense<0.000000e+00> : vector<256x128xf32>
    %20 = tpu.matmul %17, %18, %cst_13 {dimension_numbers = #tpu.dot_dimension_numbers<[1], [0], [0], [1], [0, 0, 1, 1], [], []>} : vector<256x128xbf16>, vector<128x128xbf16>, vector<256x128xf32> -> vector<256x128xf32>
    %21 = vector.broadcast %19 : vector<1x128xf32> to vector<256x128xf32>
    %22 = arith.addf %20, %21 : vector<256x128xf32>
    %cst_14 = arith.constant 0.000000e+00 : f32
    %23 = vector.broadcast %cst_14 : f32 to vector<256x128xf32>
    %24 = arith.maximumf %22, %23 : vector<256x128xf32>
    %25 = vector.shape_cast %24 : vector<256x128xf32> to vector<16x16x128xf32>
    %cst_15 = arith.constant dense<0xFF800000> : vector<16x128xf32>
    %26 = vector.multi_reduction <maximumf>, %25, %cst_15 [1] : vector<16x16x128xf32> to vector<16x128xf32>
    %27 = arith.truncf %26 : vector<16x128xf32> to vector<16x128xbf16>
    %c0_16 = arith.constant 0 : index
    %c0_17 = arith.constant 0 : index
    %28 = vector.load %arg7[%c0_16, %c0_17] : memref<16x128xbf16, #tpu.memory_space<vmem>>, vector<16x128xbf16>
    tpu.vector_store %arg7[%c0_16, %c0_17], %27 {strides = array<i32>} : memref<16x128xbf16, #tpu.memory_space<vmem>>, vector<16x128xbf16>,
    return
  }
  func.func @transform_0(%arg0: i32) -> (i32, i32) {
    %c0_i32 = arith.constant 0 : i32
    %c0_i32_0 = arith.constant 0 : i32
    return %arg0, %c0_i32 : i32, i32
  }
  func.func @transform_1(%arg0: i32) -> (i32, i32) {
    %c0_i32 = arith.constant 0 : i32
    %c0_i32_0 = arith.constant 0 : i32
    return %arg0, %c0_i32 : i32, i32
  }
  func.func @transform_2(%arg0: i32) -> (i32, i32) {
    %c0_i32 = arith.constant 0 : i32
    %c0_i32_0 = arith.constant 0 : i32
    %c0_i32_1 = arith.constant 0 : i32
    return %c0_i32, %c0_i32_0 : i32, i32
  }
  func.func @transform_3(%arg0: i32) -> (i32, i32) {
    %c0_i32 = arith.constant 0 : i32
    %c0_i32_0 = arith.constant 0 : i32
    %c0_i32_1 = arith.constant 0 : i32
    return %c0_i32, %c0_i32_0 : i32, i32
  }
  func.func @transform_4(%arg0: i32) -> (i32, i32) {
    %c0_i32 = arith.constant 0 : i32
    %c0_i32_0 = arith.constant 0 : i32
    %c0_i32_1 = arith.constant 0 : i32
    return %c0_i32, %c0_i32_0 : i32, i32
  }
  func.func @transform_5(%arg0: i32) -> (i32, i32) {
    %c0_i32 = arith.constant 0 : i32
    %c0_i32_0 = arith.constant 0 : i32
    %c0_i32_1 = arith.constant 0 : i32
    return %c0_i32, %c0_i32_0 : i32, i32
  }
  func.func @transform_6(%arg0: i32) -> (i32, i32) {
    %c0_i32 = arith.constant 0 : i32
    %c0_i32_0 = arith.constant 0 : i32
    return %arg0, %c0_i32 : i32, i32
  }
}

</mosaic_0001>

<llo_original>
// kernel: tpu_custom_call.1
$region0: #{tpu_custom_call.1}
  #allocation0 [shape = 'u32[]', space=smem, size = 0x4, offset = 0x4, fixed_abs, tag = 'smem constant byte address 0x4 - core index']
  #allocation1 [shape = 'u32[72,128]{1,0:T(1,128)}', space=vmem, size = 0x9000, scoped, tag = 'internal scratch']
  %s0 = inlined_call_operand.vmem [shape: bf16[512,9], index: 0, kind: input, shape index: {}]
  %s1 = inlined_call_operand.vmem [shape: f32[32,3], index: 1, kind: input, shape index: {}]
  %s2 = inlined_call_operand.vmem [shape: bf16[9,128], index: 2, kind: input, shape index: {}]
  %s3 = inlined_call_operand.vmem [shape: f32[1,128], index: 3, kind: input, shape index: {}]
  %s4 = inlined_call_operand.vmem [shape: bf16[128,128], index: 4, kind: input, shape index: {}]
  %s5 = inlined_call_operand.vmem [shape: f32[1,128], index: 5, kind: input, shape index: {}]
  %s6 = inlined_call_operand.hbm [shape: bf16[32,128], index: 6, kind: output, shape index: {}]
  %s7 = sld [smem:[#allocation0]]
  $region57: #{tpu_custom_call.1} parent=0
    _
  %s9 = ssub.s32 1, %s7
  %s10 = scalar_select 0, %s9, %s7
  $region1: #{tpu_custom_call.1} parent=0
    #allocation2 [shape = 'u8[8192]{0}', space=vmem, size = 0x2000, scoped, tag = 'output window, operand 0']
    #allocation3 [shape = 's32[2]{0}', space=sflag, size = 0x8, scoped, tag = 'scoped memory for tpu_custom_call.1']
    %11 = vsyncpa [#allocation3], 0
    %s12 = scalar_lea.sflag [#allocation3], 1
    %13 = vsyncpa %s12, 0
    loop: start=0, step=1, limit=4
    $region2: #{tpu_custom_call.1} parent=1 // loop_pre_header
      _
    $region3: #{tpu_custom_call.1} parent=1 // loop_header
      %s15 = sphi 0, %s19
      %p16 = scmp.ge.s32.totalorder %s15, 4
      %s25 = sphi 0, %s27
      %s28 = sphi 0, %s25
      %s29 = sphi 0, %s28
      %s45 = sphi 0, %s29
      %s51 = sphi 0, %s53
      %s54 = sphi 0, %s51
      %s55 = sphi 0, %s54
      %s71 = sphi 0, %s55
      %s75 = sphi 0, %s75
      %s77 = sphi 0, %s75
      %s78 = sphi 0, %s77
      %s92 = sphi 0, %s78
      %s96 = sphi 0, %s96
      %s98 = sphi 0, %s96
      %s99 = sphi 0, %s98
      %s113 = sphi 0, %s99
      %s117 = sphi 0, %s117
      %s119 = sphi 0, %s117
      %s120 = sphi 0, %s119
      %s134 = sphi 0, %s120
      %s138 = sphi 0, %s138
      %s140 = sphi 0, %s138
      %s141 = sphi 0, %s140
      %s155 = sphi 0, %s141
      %s161 = sphi 0, %s163
      %s164 = sphi 0, %s161
      %s165 = sphi 0, %s164
      %s181 = sphi 0, %s165
    $region4: #{tpu_custom_call.1} parent=1 // loop_header_branch
      %18 = sbr.rel (%p16) target = $region8
    $region5: #{tpu_custom_call.1} parent=1 // loop_body
      %s20 = ssub.s32 %s15, 1
      %s21 = ssub.s32 %s15, 2
      %s22 = sadd.s32 %s15, 1
      %s23 = ssub.s32 %s15, %s22
      %p24 = scmp.eq.s32.totalorder %s23, 0
      %s26 = sadd.s32 %s25, 1
      %s27 = scalar_select %p24, %s25, %s26
      %p30 = pneg %p24
      %p31 = scmp.eq.s32.totalorder %s15, 1
      %p32 = por %p30, %p31
      %p33 = scmp.ne.s32.totalorder %s25, %s28
      %p34 = scmp.eq.s32.totalorder %s15, 0
      %p35 = por %p33, %p34
      %p36 = scmp.ne.s32.totalorder %s25, %s28
      %p37 = scmp.eq.s32.totalorder %s20, 1
      %p38 = por %p36, %p37
      %p39 = scmp.ne.s32.totalorder %s28, %s29
      %p40 = scmp.eq.s32.totalorder %s20, 0
      %p41 = por %p39, %p40
      %p42 = scmp.ne.s32.totalorder %s28, %s29
      %p43 = scmp.eq.s32.totalorder %s21, 1
      %p44 = por %p42, %p43
      %p46 = scmp.ne.s32.totalorder %s29, %s45
      %p47 = scmp.eq.s32.totalorder %s21, 0
      %p48 = por %p46, %p47
      %s49 = ssub.s32 %s15, %s22
      %p50 = scmp.eq.s32.totalorder %s49, 0
      %s52 = sadd.s32 %s51, 1
      %s53 = scalar_select %p50, %s51, %s52
      %p56 = pneg %p50
      %p57 = scmp.eq.s32.totalorder %s15, 1
      %p58 = por %p56, %p57
      %p59 = scmp.ne.s32.totalorder %s51, %s54
      %p60 = scmp.eq.s32.totalorder %s15, 0
      %p61 = por %p59, %p60
      %p62 = scmp.ne.s32.totalorder %s51, %s54
      %p63 = scmp.eq.s32.totalorder %s20, 1
      %p64 = por %p62, %p63
      %p65 = scmp.ne.s32.totalorder %s54, %s55
      %p66 = scmp.eq.s32.totalorder %s20, 0
      %p67 = por %p65, %p66
      %p68 = scmp.ne.s32.totalorder %s54, %s55
      %p69 = scmp.eq.s32.totalorder %s21, 1
      %p70 = por %p68, %p69
      %p72 = scmp.ne.s32.totalorder %s55, %s71
      %p73 = scmp.eq.s32.totalorder %s21, 0
      %p74 = por %p72, %p73
      %s76 = sadd.s32 %s75, 1
      %p79 = scmp.eq.s32.totalorder %s15, 1
      %p80 = scmp.ne.s32.totalorder %s75, %s77
      %p81 = scmp.eq.s32.totalorder %s15, 0
      %p82 = por %p80, %p81
      %p83 = scmp.ne.s32.totalorder %s75, %s77
      %p84 = scmp.eq.s32.totalorder %s20, 1
      %p85 = por %p83, %p84
      %p86 = scmp.ne.s32.totalorder %s77, %s78
      %p87 = scmp.eq.s32.totalorder %s20, 0
      %p88 = por %p86, %p87
      %p89 = scmp.ne.s32.totalorder %s77, %s78
      %p90 = scmp.eq.s32.totalorder %s21, 1
      %p91 = por %p89, %p90
      %p93 = scmp.ne.s32.totalorder %s78, %s92
      %p94 = scmp.eq.s32.totalorder %s21, 0
      %p95 = por %p93, %p94
      %s97 = sadd.s32 %s96, 1
      %p100 = scmp.eq.s32.totalorder %s15, 1
      %p101 = scmp.ne.s32.totalorder %s96, %s98
      %p102 = scmp.eq.s32.totalorder %s15, 0
      %p103 = por %p101, %p102
      %p104 = scmp.ne.s32.totalorder %s96, %s98
      %p105 = scmp.eq.s32.totalorder %s20, 1
      %p106 = por %p104, %p105
      %p107 = scmp.ne.s32.totalorder %s98, %s99
      %p108 = scmp.eq.s32.totalorder %s20, 0
      %p109 = por %p107, %p108
      %p110 = scmp.ne.s32.totalorder %s98, %s99
      %p111 = scmp.eq.s32.totalorder %s21, 1
      %p112 = por %p110, %p111
      %p114 = scmp.ne.s32.totalorder %s99, %s113
      %p115 = scmp.eq.s32.totalorder %s21, 0
      %p116 = por %p114, %p115
      %s118 = sadd.s32 %s117, 1
      %p121 = scmp.eq.s32.totalorder %s15, 1
      %p122 = scmp.ne.s32.totalorder %s117, %s119
      %p123 = scmp.eq.s32.totalorder %s15, 0
      %p124 = por %p122, %p123
      %p125 = scmp.ne.s32.totalorder %s117, %s119
      %p126 = scmp.eq.s32.totalorder %s20, 1
      %p127 = por %p125, %p126
      %p128 = scmp.ne.s32.totalorder %s119, %s120
      %p129 = scmp.eq.s32.totalorder %s20, 0
      %p130 = por %p128, %p129
      %p131 = scmp.ne.s32.totalorder %s119, %s120
      %p132 = scmp.eq.s32.totalorder %s21, 1
      %p133 = por %p131, %p132
      %p135 = scmp.ne.s32.totalorder %s120, %s134
      %p136 = scmp.eq.s32.totalorder %s21, 0
      %p137 = por %p135, %p136
      %s139 = sadd.s32 %s138, 1
      %p142 = scmp.eq.s32.totalorder %s15, 1
      %p143 = scmp.ne.s32.totalorder %s138, %s140
      %p144 = scmp.eq.s32.totalorder %s15, 0
      %p145 = por %p143, %p144
      %p146 = scmp.ne.s32.totalorder %s138, %s140
      %p147 = scmp.eq.s32.totalorder %s20, 1
      %p148 = por %p146, %p147
      %p149 = scmp.ne.s32.totalorder %s140, %s141
      %p150 = scmp.eq.s32.totalorder %s20, 0
      %p151 = por %p149, %p150
      %p152 = scmp.ne.s32.totalorder %s140, %s141
      %p153 = scmp.eq.s32.totalorder %s21, 1
      %p154 = por %p152, %p153
      %p156 = scmp.ne.s32.totalorder %s141, %s155
      %p157 = scmp.eq.s32.totalorder %s21, 0
      %p158 = por %p156, %p157
      %s159 = ssub.s32 %s15, %s22
      %p160 = scmp.eq.s32.totalorder %s159, 0
      %s162 = sadd.s32 %s161, 1
      %s163 = scalar_select %p160, %s161, %s162
      %p166 = pneg %p160
      %p167 = scmp.eq.s32.totalorder %s15, 1
      %p168 = por %p166, %p167
      %p169 = scmp.ne.s32.totalorder %s161, %s164
      %p170 = scmp.eq.s32.totalorder %s15, 0
      %p171 = por %p169, %p170
      %p172 = scmp.ne.s32.totalorder %s161, %s164
      %p173 = scmp.eq.s32.totalorder %s20, 1
      %p174 = por %p172, %p173
      %p175 = scmp.ne.s32.totalorder %s164, %s165
      %p176 = scmp.eq.s32.totalorder %s20, 0
      %p177 = por %p175, %p176
      %p178 = scmp.ne.s32.totalorder %s164, %s165
      %p179 = scmp.eq.s32.totalorder %s21, 1
      %p180 = por %p178, %p179
      %p182 = scmp.ne.s32.totalorder %s165, %s181
      %p183 = scmp.eq.s32.totalorder %s21, 0
      %p184 = por %p182, %p183
      %p185 = scmp.le.s32.totalorder 1, %s15
      %p186 = scmp.lt.s32.totalorder %s15, 3
      %p187 = pnand %p185, %p186
      %p188 = pneg %p187
      // Predicated region
      $region9: #{tpu_custom_call.1} parent=5 // pred_check
        _
      $region10: #{tpu_custom_call.1} parent=5 // pred_check_branch
        %190 = sbr.rel (%p187) target = $region12
      $region11: #{tpu_custom_call.1} parent=5 // pred_region
        %s191 = ssub.s32 %s15, 1
        // Predicated region
        $region13: #{tpu_custom_call.1} parent=11 // pred_check
          %p192 = pneg %p88
        $region14: #{tpu_custom_call.1} parent=11 // pred_check_branch
          %194 = sbr.rel (%p192) target = $region16
        $region15: #{tpu_custom_call.1} parent=11 // pred_region
          _
        $region16: #{tpu_custom_call.1} parent=11 // pred_fallthru
          _
        // Predicated region
        $region17: #{tpu_custom_call.1} parent=11 // pred_check
          %p195 = pneg %p109
        $region18: #{tpu_custom_call.1} parent=11 // pred_check_branch
          %197 = sbr.rel (%p195) target = $region20
        $region19: #{tpu_custom_call.1} parent=11 // pred_region
          _
        $region20: #{tpu_custom_call.1} parent=11 // pred_fallthru
          _
        // Predicated region
        $region21: #{tpu_custom_call.1} parent=11 // pred_check
          %p198 = pneg %p130
        $region22: #{tpu_custom_call.1} parent=11 // pred_check_branch
          %200 = sbr.rel (%p198) target = $region24
        $region23: #{tpu_custom_call.1} parent=11 // pred_region
          _
        $region24: #{tpu_custom_call.1} parent=11 // pred_fallthru
          _
        // Predicated region
        $region25: #{tpu_custom_call.1} parent=11 // pred_check
          %p201 = pneg %p151
        $region26: #{tpu_custom_call.1} parent=11 // pred_check_branch
          %203 = sbr.rel (%p201) target = $region28
        $region27: #{tpu_custom_call.1} parent=11 // pred_region
          _
        $region28: #{tpu_custom_call.1} parent=11 // pred_fallthru
          _
      $region12: #{tpu_custom_call.1} parent=5 // pred_fallthru
        _
      %p204 = scmp.lt.s32.totalorder %s15, 2
      // Predicated region
      $region29: #{tpu_custom_call.1} parent=5 // pred_check
        %p205 = pneg %p204
      $region30: #{tpu_custom_call.1} parent=5 // pred_check_branch
        %207 = sbr.rel (%p205) target = $region32
      $region31: #{tpu_custom_call.1} parent=5 // pred_region
        // Predicated region
        $region33: #{tpu_custom_call.1} parent=31 // pred_check
          %p208 = pneg %p35
        $region34: #{tpu_custom_call.1} parent=31 // pred_check_branch
          %210 = sbr.rel (%p208) target = $region36
        $region35: #{tpu_custom_call.1} parent=31 // pred_region
          %s211 = smul.u32 32, %s15
          %p212 = scmp.lt.s32.totalorder %s211, 63
          %s213 = scalar_select %p212, %s211, 63
          %s214 = smul.addr %s213, 4
          %s215 = scalar_lea.vmem %s0, %s214
          %s216 = smul.u32 32, %s15
        $region36: #{tpu_custom_call.1} parent=31 // pred_fallthru
          _
        // Predicated region
        $region37: #{tpu_custom_call.1} parent=31 // pred_check
          %p217 = pneg %p61
        $region38: #{tpu_custom_call.1} parent=31 // pred_check_branch
          %219 = sbr.rel (%p217) target = $region40
        $region39: #{tpu_custom_call.1} parent=31 // pred_region
          %s220 = smul.u32 2, %s15
          %p221 = scmp.lt.s32.totalorder %s220, 3
          %s222 = scalar_select %p221, %s220, 3
          %s223 = smul.addr %s222, 8
          %s224 = scalar_lea.vmem %s1, %s223
          %s225 = smul.u32 2, %s15
        $region40: #{tpu_custom_call.1} parent=31 // pred_fallthru
          _
      $region32: #{tpu_custom_call.1} parent=5 // pred_fallthru
        _
      %p226 = scmp.le.s32.totalorder 1, %s15
      %p227 = scmp.lt.s32.totalorder %s15, 3
      %p228 = pnand %p226, %p227
      %p229 = pneg %p228
      // Predicated region
      $region41: #{tpu_custom_call.1} parent=5 // pred_check
        _
      $region42: #{tpu_custom_call.1} parent=5 // pred_check_branch
        %231 = sbr.rel (%p228) target = $region44
      $region43: #{tpu_custom_call.1} parent=5 // pred_region
        %s232 = ssub.s32 %s15, 1
        %s233 = smul.u32 32, %s20
        %p234 = scmp.lt.s32.totalorder %s233, 63
        %s235 = scalar_select %p234, %s233, 63
        %s236 = smul.addr %s235, 4
        %s237 = scalar_lea.vmem %s0, %s236
        %p238 = pneg %p41
        %p239 = pneg %p38
        %s240 = smul.u32 2, %s20
        %p241 = scmp.lt.s32.totalorder %s240, 3
        %s242 = scalar_select %p241, %s240, 3
        %s243 = smul.addr %s242, 8
        %s244 = scalar_lea.vmem %s1, %s243
        %p245 = pneg %p67
        %p246 = pneg %p64
        %p247 = pneg %p88
        %p248 = pneg %p85
        %p249 = pneg %p109
        %p250 = pneg %p106
        %p251 = pneg %p130
        %p252 = pneg %p127
        %p253 = pneg %p151
        %p254 = pneg %p148
        %p255 = pneg %p177
        %p256 = pneg %p174
        %s257 = sand.u32 %s164, 1
        %s258 = scalar_lea.sflag [#allocation3], %s257
        %s259 = sand.u32 %s164, 1
        %s260 = smul.addr %s259, 8
        %s261 = scalar_lea.vmem [#allocation2], %s260
        %s262 = smul.u32 32, %s20
        %p263 = scmp.lt.s32.totalorder %s262, 63
        %s264 = scalar_select %p263, %s262, 63
        %s265 = smul.addr %s264, 4
        %s266 = scalar_lea.vmem %s0, %s265
        %s267 = smul.u32 32, %s20
        %s268 = smul.u32 2, %s20
        %p269 = scmp.lt.s32.totalorder %s268, 3
        %s270 = scalar_select %p269, %s268, 3
        %s271 = smul.addr %s270, 8
        %s272 = scalar_lea.vmem %s1, %s271
        %s273 = smul.u32 2, %s20
        %s274 = smul.u32 2, %s20
        %v276 = vld [vmem:[%s266] sm:$0xf]
        %v277 = vld [vmem:[%s266 + $0x4] sm:$0xf]
        %v278 = vld [vmem:[%s266 + $0x8] sm:$0xf]
        %v279 = vld [vmem:[%s266 + $0xc] sm:$0xf]
        %v280 = vld [vmem:[%s266 + $0x10] sm:$0xf]
        %v281 = vld [vmem:[%s266 + $0x14] sm:$0xf]
        %v282 = vld [vmem:[%s266 + $0x18] sm:$0xf]
        %v283 = vld [vmem:[%s266 + $0x1c] sm:$0xf]
        %v284 = vld [vmem:[%s266 + $0x20] sm:$0xf]
        %v285 = vld [vmem:[%s266 + $0x24] sm:$0xf]
        %v286 = vld [vmem:[%s266 + $0x28] sm:$0xf]
        %v287 = vld [vmem:[%s266 + $0x2c] sm:$0xf]
        %v288 = vld [vmem:[%s266 + $0x30] sm:$0xf]
        %v289 = vld [vmem:[%s266 + $0x34] sm:$0xf]
        %v290 = vld [vmem:[%s266 + $0x38] sm:$0xf]
        %v291 = vld [vmem:[%s266 + $0x3c] sm:$0xf]
        %v292 = vld [vmem:[%s266 + $0x40] sm:$0xf]
        %v293 = vld [vmem:[%s266 + $0x44] sm:$0xf]
        %v294 = vld [vmem:[%s266 + $0x48] sm:$0xf]
        %v295 = vld [vmem:[%s266 + $0x4c] sm:$0xf]
        %v296 = vld [vmem:[%s266 + $0x50] sm:$0xf]
        %v297 = vld [vmem:[%s266 + $0x54] sm:$0xf]
        %v298 = vld [vmem:[%s266 + $0x58] sm:$0xf]
        %v299 = vld [vmem:[%s266 + $0x5c] sm:$0xf]
        %v300 = vld [vmem:[%s266 + $0x60] sm:$0xf]
        %v301 = vld [vmem:[%s266 + $0x64] sm:$0xf]
        %v302 = vld [vmem:[%s266 + $0x68] sm:$0xf]
        %v303 = vld [vmem:[%s266 + $0x6c] sm:$0xf]
        %v304 = vld [vmem:[%s266 + $0x70] sm:$0xf]
        %v305 = vld [vmem:[%s266 + $0x74] sm:$0xf]
        %v306 = vld [vmem:[%s266 + $0x78] sm:$0xf]
        %v307 = vld [vmem:[%s266 + $0x7c] sm:$0xf]
        %v308 = vld [vmem:[%s2] sm:$0xf]
        %v309 = vld [vmem:[%s2 + $0x4] sm:$0x1]
        %v310 = vld [vmem:[%s3] sm:$0x1]
        %v343 = vunpack.c.l.b16 %v276
        %v344 = vunpack.c.l.b16 %v277
        %v345 = vunpack.c.l.b16 %v278
        %v346 = vunpack.c.l.b16 %v279
        %v347 = vunpack.c.l.b16 %v280
        %v348 = vunpack.c.l.b16 %v281
        %v349 = vunpack.c.l.b16 %v282
        %v350 = vunpack.c.l.b16 %v283
        %v351 = vunpack.c.l.b16 %v284
        %v352 = vunpack.c.l.b16 %v285
        %v353 = vunpack.c.l.b16 %v286
        %v354 = vunpack.c.l.b16 %v287
        %v355 = vunpack.c.l.b16 %v288
        %v356 = vunpack.c.l.b16 %v289
        %v357 = vunpack.c.l.b16 %v290
        %v358 = vunpack.c.l.b16 %v291
        %v359 = vunpack.c.l.b16 %v292
        %v360 = vunpack.c.l.b16 %v293
        %v361 = vunpack.c.l.b16 %v294
        %v362 = vunpack.c.l.b16 %v295
        %v363 = vunpack.c.l.b16 %v296
        %v364 = vunpack.c.l.b16 %v297
        %v365 = vunpack.c.l.b16 %v298
        %v366 = vunpack.c.l.b16 %v299
        %v367 = vunpack.c.l.b16 %v300
        %v368 = vunpack.c.l.b16 %v301
        %v369 = vunpack.c.l.b16 %v302
        %v370 = vunpack.c.l.b16 %v303
        %v371 = vunpack.c.l.b16 %v304
        %v372 = vunpack.c.l.b16 %v305
        %v373 = vunpack.c.l.b16 %v306
        %v374 = vunpack.c.l.b16 %v307
        %v375 = vpack.c.b16 %v344, %v343
        %v376 = vpack.c.b16 %v346, %v345
        %v377 = vpack.c.b16 %v348, %v347
        %v378 = vpack.c.b16 %v350, %v349
        %v379 = vpack.c.b16 %v352, %v351
        %v380 = vpack.c.b16 %v354, %v353
        %v381 = vpack.c.b16 %v356, %v355
        %v382 = vpack.c.b16 %v358, %v357
        %v383 = vpack.c.b16 %v360, %v359
        %v384 = vpack.c.b16 %v362, %v361
        %v385 = vpack.c.b16 %v364, %v363
        %v386 = vpack.c.b16 %v366, %v365
        %v387 = vpack.c.b16 %v368, %v367
        %v388 = vpack.c.b16 %v370, %v369
        %v389 = vpack.c.b16 %v372, %v371
        %v390 = vpack.c.b16 %v374, %v373
        %v393 = vunpack.c.l.b16 %v308
        %v394 = vunpack.c.l.b16 %v309
        %v395 = vpack.c.b16 %v394, %v393
        %vm396 = vcmask 72704
        %v398 = vsel %vm396, %v375, 0
        %v401 = vsel %vm396, %v376, 0
        %v404 = vsel %vm396, %v377, 0
        %v407 = vsel %vm396, %v378, 0
        %v410 = vsel %vm396, %v379, 0
        %v413 = vsel %vm396, %v380, 0
        %v416 = vsel %vm396, %v381, 0
        %v419 = vsel %vm396, %v382, 0
        %v422 = vsel %vm396, %v383, 0
        %v425 = vsel %vm396, %v384, 0
        %v428 = vsel %vm396, %v385, 0
        %v431 = vsel %vm396, %v386, 0
        %v434 = vsel %vm396, %v387, 0
        %v437 = vsel %vm396, %v388, 0
        %v440 = vsel %vm396, %v389, 0
        %v443 = vsel %vm396, %v390, 0
        %vm445 = vcmask 1043456
        %vm446 = vcmask 1044480
        %v447 = vsel %vm445, 4294967295, 65535
        %v448 = vsel %vm446, %v447, 0
        %v450 = vand.u32 %v395, %v448
        %452 = vmatpush.bf16.msra.mxu0 0
        %453 = vmatpush.bf16.msra.mxu0 0
        %454 = vmatpush.bf16.msra.mxu0 0
        %455 = vmatpush.bf16.msra.mxu0 0
        %456 = vmatpush.bf16.msra.mxu0 0
        %457 = vmatpush.bf16.msra.mxu0 0
        %458 = vmatpush.bf16.msra.mxu0 0
        %459 = vmatpush.bf16.msra.mxu0 %v450
        %460 = vmatmul.bf16.gmra.mxu0 %v398
        %v461 = vpop.f32.mrf.mxu0
        %v462 = vadd.f32 0.0, %v461
        %v463 = vpop.f32.mrf.mxu0
        %v464 = vadd.f32 0.0, %v463
        %465 = vmatmul.bf16.gmra.mxu0 %v401
        %v466 = vpop.f32.mrf.mxu0
        %v467 = vadd.f32 0.0, %v466
        %v468 = vpop.f32.mrf.mxu0
        %v469 = vadd.f32 0.0, %v468
        %470 = vmatmul.bf16.gmra.mxu0 %v404
        %v471 = vpop.f32.mrf.mxu0
        %v472 = vadd.f32 0.0, %v471
        %v473 = vpop.f32.mrf.mxu0
        %v474 = vadd.f32 0.0, %v473
        %475 = vmatmul.bf16.gmra.mxu0 %v407
        %v476 = vpop.f32.mrf.mxu0
        %v477 = vadd.f32 0.0, %v476
        %v478 = vpop.f32.mrf.mxu0
        %v479 = vadd.f32 0.0, %v478
        %480 = vmatmul.bf16.gmra.mxu0 %v410
        %v481 = vpop.f32.mrf.mxu0
        %v482 = vadd.f32 0.0, %v481
        %v483 = vpop.f32.mrf.mxu0
        %v484 = vadd.f32 0.0, %v483
        %485 = vmatmul.bf16.gmra.mxu0 %v413
        %v486 = vpop.f32.mrf.mxu0
        %v487 = vadd.f32 0.0, %v486
        %v488 = vpop.f32.mrf.mxu0
        %v489 = vadd.f32 0.0, %v488
        %490 = vmatmul.bf16.gmra.mxu0 %v416
        %v491 = vpop.f32.mrf.mxu0
        %v492 = vadd.f32 0.0, %v491
        %v493 = vpop.f32.mrf.mxu0
        %v494 = vadd.f32 0.0, %v493
        %495 = vmatmul.bf16.gmra.mxu0 %v419
        %v496 = vpop.f32.mrf.mxu0
        %v497 = vadd.f32 0.0, %v496
        %v498 = vpop.f32.mrf.mxu0
        %v499 = vadd.f32 0.0, %v498
        %500 = vmatmul.bf16.gmra.mxu0 %v422
        %v501 = vpop.f32.mrf.mxu0
        %v502 = vadd.f32 0.0, %v501
        %v503 = vpop.f32.mrf.mxu0
        %v504 = vadd.f32 0.0, %v503
        %505 = vmatmul.bf16.gmra.mxu0 %v425
        %v506 = vpop.f32.mrf.mxu0
        %v507 = vadd.f32 0.0, %v506
        %v508 = vpop.f32.mrf.mxu0
        %v509 = vadd.f32 0.0, %v508
        %510 = vmatmul.bf16.gmra.mxu0 %v428
        %v511 = vpop.f32.mrf.mxu0
        %v512 = vadd.f32 0.0, %v511
        %v513 = vpop.f32.mrf.mxu0
        %v514 = vadd.f32 0.0, %v513
        %515 = vmatmul.bf16.gmra.mxu0 %v431
        %v516 = vpop.f32.mrf.mxu0
        %v517 = vadd.f32 0.0, %v516
        %v518 = vpop.f32.mrf.mxu0
        %v519 = vadd.f32 0.0, %v518
        %520 = vmatmul.bf16.gmra.mxu0 %v434
        %v521 = vpop.f32.mrf.mxu0
        %v522 = vadd.f32 0.0, %v521
        %v523 = vpop.f32.mrf.mxu0
        %v524 = vadd.f32 0.0, %v523
        %525 = vmatmul.bf16.gmra.mxu0 %v437
        %v526 = vpop.f32.mrf.mxu0
        %v527 = vadd.f32 0.0, %v526
        %v528 = vpop.f32.mrf.mxu0
        %v529 = vadd.f32 0.0, %v528
        %530 = vmatmul.bf16.gmra.mxu0 %v440
        %v531 = vpop.f32.mrf.mxu0
        %v532 = vadd.f32 0.0, %v531
        %v533 = vpop.f32.mrf.mxu0
        %v534 = vadd.f32 0.0, %v533
        %535 = vmatmul.bf16.gmra.mxu0 %v443
        %v536 = vpop.f32.mrf.mxu0
        %v537 = vadd.f32 0.0, %v536
        %v538 = vpop.f32.mrf.mxu0
        %v539 = vadd.f32 0.0, %v538
        %540 = vdwg.mxu0
        %v541 = vld [vmem:[%s272] sm:$0xff]
        %v542 = vld [vmem:[%s272 + $0x8] sm:$0xff]
        %v543 = vpack.c.bf16 %v542, %v541
        %vm544 = vcmask 23552
        %v546 = vsel %vm544, %v543, 0
        %vm548 = vcmask 1040384
        %vm549 = vcmask 1041408
        %v550 = vsel %vm548, 4294967295, 65535
        %v551 = vsel %vm549, %v550, 0
        %v553 = vand.u32 %v308, %v551
        %555 = vmatpush.bf16.msra.mxu0 0
        %556 = vmatpush.bf16.msra.mxu0 0
        %557 = vmatpush.bf16.msra.mxu0 0
        %558 = vmatpush.bf16.msra.mxu0 0
        %559 = vmatpush.bf16.msra.mxu0 0
        %560 = vmatpush.bf16.msra.mxu0 0
        %561 = vmatpush.bf16.msra.mxu0 0
        %562 = vmatpush.bf16.msra.mxu0 %v553
        %563 = vmatmul.bf16.gmra.mxu0 %v546
        %v564 = vpop.f32.mrf.mxu0
        %v565 = vadd.f32 0.0, %v564
        %v566 = vpop.f32.mrf.mxu0
        %v567 = vadd.f32 0.0, %v566
        %568 = vdwg.mxu0
        %v571 = vrot.slane %v565, 1
        %v572 = vrot.slane %v565, 2
        %v573 = vrot.slane %v565, 3
        %v574 = vrot.slane %v565, 4
        %v575 = vrot.slane %v565, 5
        %v576 = vrot.slane %v565, 6
        %v577 = vrot.slane %v565, 7
        %v578 = vrot.slane %v567, 1
        %v579 = vrot.slane %v567, 2
        %v580 = vrot.slane %v567, 3
        %v581 = vrot.slane %v567, 4
        %v582 = vrot.slane %v567, 5
        %v583 = vrot.slane %v567, 6
        %v584 = vrot.slane %v567, 7
        %v585 = vperm.slane %v565, 0
        %v586 = vperm.slane %v571, 0
        %v587 = vperm.slane %v572, 0
        %v588 = vperm.slane %v573, 0
        %v589 = vperm.slane %v574, 0
        %v590 = vperm.slane %v575, 0
        %v591 = vperm.slane %v576, 0
        %v592 = vperm.slane %v577, 0
        %v593 = vperm.slane %v567, 0
        %v594 = vperm.slane %v578, 0
        %v595 = vperm.slane %v579, 0
        %v596 = vperm.slane %v580, 0
        %v597 = vperm.slane %v581, 0
        %v598 = vperm.slane %v582, 0
        %v599 = vperm.slane %v583, 0
        %v600 = vperm.slane %v584, 0
        %v617 = vsub.f32 %v462, %v585
        %v618 = vsub.f32 %v464, %v585
        %v619 = vsub.f32 %v467, %v586
        %v620 = vsub.f32 %v469, %v586
        %v621 = vsub.f32 %v472, %v587
        %v622 = vsub.f32 %v474, %v587
        %v623 = vsub.f32 %v477, %v588
        %v624 = vsub.f32 %v479, %v588
        %v625 = vsub.f32 %v482, %v589
        %v626 = vsub.f32 %v484, %v589
        %v627 = vsub.f32 %v487, %v590
        %v628 = vsub.f32 %v489, %v590
        %v629 = vsub.f32 %v492, %v591
        %v630 = vsub.f32 %v494, %v591
        %v631 = vsub.f32 %v497, %v592
        %v632 = vsub.f32 %v499, %v592
        %v633 = vsub.f32 %v502, %v593
        %v634 = vsub.f32 %v504, %v593
        %v635 = vsub.f32 %v507, %v594
        %v636 = vsub.f32 %v509, %v594
        %v637 = vsub.f32 %v512, %v595
        %v638 = vsub.f32 %v514, %v595
        %v639 = vsub.f32 %v517, %v596
        %v640 = vsub.f32 %v519, %v596
        %v641 = vsub.f32 %v522, %v597
        %v642 = vsub.f32 %v524, %v597
        %v643 = vsub.f32 %v527, %v598
        %v644 = vsub.f32 %v529, %v598
        %v645 = vsub.f32 %v532, %v599
        %v646 = vsub.f32 %v534, %v599
        %v647 = vsub.f32 %v537, %v600
        %v648 = vsub.f32 %v539, %v600
        %v650 = vperm.slane %v310, 0
        %v652 = vadd.f32 %v617, %v650
        %v653 = vadd.f32 %v618, %v650
        %v654 = vadd.f32 %v619, %v650
        %v655 = vadd.f32 %v620, %v650
        %v656 = vadd.f32 %v621, %v650
        %v657 = vadd.f32 %v622, %v650
        %v658 = vadd.f32 %v623, %v650
        %v659 = vadd.f32 %v624, %v650
        %v660 = vadd.f32 %v625, %v650
        %v661 = vadd.f32 %v626, %v650
        %v662 = vadd.f32 %v627, %v650
        %v663 = vadd.f32 %v628, %v650
        %v664 = vadd.f32 %v629, %v650
        %v665 = vadd.f32 %v630, %v650
        %v666 = vadd.f32 %v631, %v650
        %v667 = vadd.f32 %v632, %v650
        %v668 = vadd.f32 %v633, %v650
        %v669 = vadd.f32 %v634, %v650
        %v670 = vadd.f32 %v635, %v650
        %v671 = vadd.f32 %v636, %v650
        %v672 = vadd.f32 %v637, %v650
        %v673 = vadd.f32 %v638, %v650
        %v674 = vadd.f32 %v639, %v650
        %v675 = vadd.f32 %v640, %v650
        %v676 = vadd.f32 %v641, %v650
        %v677 = vadd.f32 %v642, %v650
        %v678 = vadd.f32 %v643, %v650
        %v679 = vadd.f32 %v644, %v650
        %v680 = vadd.f32 %v645, %v650
        %v681 = vadd.f32 %v646, %v650
        %v682 = vadd.f32 %v647, %v650
        %v683 = vadd.f32 %v648, %v650
        %v684 = vmax.f32 %v652, 0.0
        %v685 = vmax.f32 %v653, 0.0
        %v686 = vmax.f32 %v654, 0.0
        %v687 = vmax.f32 %v655, 0.0
        %v688 = vmax.f32 %v656, 0.0
        %v689 = vmax.f32 %v657, 0.0
        %v690 = vmax.f32 %v658, 0.0
        %v691 = vmax.f32 %v659, 0.0
        %v692 = vmax.f32 %v660, 0.0
        %v693 = vmax.f32 %v661, 0.0
        %v694 = vmax.f32 %v662, 0.0
        %v695 = vmax.f32 %v663, 0.0
        %v696 = vmax.f32 %v664, 0.0
        %v697 = vmax.f32 %v665, 0.0
        %v698 = vmax.f32 %v666, 0.0
        %v699 = vmax.f32 %v667, 0.0
        %v700 = vmax.f32 %v668, 0.0
        %v701 = vmax.f32 %v669, 0.0
        %v702 = vmax.f32 %v670, 0.0
        %v703 = vmax.f32 %v671, 0.0
        %v704 = vmax.f32 %v672, 0.0
        %v705 = vmax.f32 %v673, 0.0
        %v706 = vmax.f32 %v674, 0.0
        %v707 = vmax.f32 %v675, 0.0
        %v708 = vmax.f32 %v676, 0.0
        %v709 = vmax.f32 %v677, 0.0
        %v710 = vmax.f32 %v678, 0.0
        %v711 = vmax.f32 %v679, 0.0
        %v712 = vmax.f32 %v680, 0.0
        %v713 = vmax.f32 %v681, 0.0
        %v714 = vmax.f32 %v682, 0.0
        %v715 = vmax.f32 %v683, 0.0
        %v716 = vpack.c.bf16 %v685, %v684
        %v717 = vpack.c.bf16 %v687, %v686
        %v718 = vpack.c.bf16 %v689, %v688
        %v719 = vpack.c.bf16 %v691, %v690
        %v720 = vpack.c.bf16 %v693, %v692
        %v721 = vpack.c.bf16 %v695, %v694
        %v722 = vpack.c.bf16 %v697, %v696
        %v723 = vpack.c.bf16 %v699, %v698
        %v724 = vpack.c.bf16 %v701, %v700
        %v725 = vpack.c.bf16 %v703, %v702
        %v726 = vpack.c.bf16 %v705, %v704
        %v727 = vpack.c.bf16 %v707, %v706
        %v728 = vpack.c.bf16 %v709, %v708
        %v729 = vpack.c.bf16 %v711, %v710
        %v730 = vpack.c.bf16 %v713, %v712
        %v731 = vpack.c.bf16 %v715, %v714
        %v732 = vld [vmem:[%s4] sm:$0xf]
        %v733 = vld [vmem:[%s4 + $0x4] sm:$0xf]
        %v734 = vld [vmem:[%s4 + $0x8] sm:$0xf]
        %v735 = vld [vmem:[%s4 + $0xc] sm:$0xf]
        %v736 = vld [vmem:[%s4 + $0x10] sm:$0xf]
        %v737 = vld [vmem:[%s4 + $0x14] sm:$0xf]
        %v738 = vld [vmem:[%s4 + $0x18] sm:$0xf]
        %v739 = vld [vmem:[%s4 + $0x1c] sm:$0xf]
        %v740 = vld [vmem:[%s4 + $0x20] sm:$0xf]
        %v741 = vld [vmem:[%s4 + $0x24] sm:$0xf]
        %v742 = vld [vmem:[%s4 + $0x28] sm:$0xf]
        %v743 = vld [vmem:[%s4 + $0x2c] sm:$0xf]
        %v744 = vld [vmem:[%s4 + $0x30] sm:$0xf]
        %v745 = vld [vmem:[%s4 + $0x34] sm:$0xf]
        %v746 = vld [vmem:[%s4 + $0x38] sm:$0xf]
        %v747 = vld [vmem:[%s4 + $0x3c] sm:$0xf]
        %v748 = vld [vmem:[%s5] sm:$0x1]
        %v750 = vperm.slane %v748, 0
        %v768 = vunpack.c.l.b16 %v732
        %v769 = vunpack.c.l.b16 %v733
        %v770 = vunpack.c.l.b16 %v734
        %v771 = vunpack.c.l.b16 %v735
        %v772 = vunpack.c.l.b16 %v736
        %v773 = vunpack.c.l.b16 %v737
        %v774 = vunpack.c.l.b16 %v738
        %v775 = vunpack.c.l.b16 %v739
        %v776 = vunpack.c.l.b16 %v740
        %v777 = vunpack.c.l.b16 %v741
        %v778 = vunpack.c.l.b16 %v742
        %v779 = vunpack.c.l.b16 %v743
        %v780 = vunpack.c.l.b16 %v744
        %v781 = vunpack.c.l.b16 %v745
        %v782 = vunpack.c.l.b16 %v746
        %v783 = vunpack.c.l.b16 %v747
        %v784 = vpack.c.b16 %v769, %v768
        %v785 = vpack.c.b16 %v771, %v770
        %v786 = vpack.c.b16 %v773, %v772
        %v787 = vpack.c.b16 %v775, %v774
        %v788 = vpack.c.b16 %v777, %v776
        %v789 = vpack.c.b16 %v779, %v778
        %v790 = vpack.c.b16 %v781, %v780
        %v791 = vpack.c.b16 %v783, %v782
        %800 = vmatpush.bf16.msra.mxu0 %v791
        %801 = vmatpush.bf16.msra.mxu0 %v790
        %802 = vmatpush.bf16.msra.mxu0 %v789
        %803 = vmatpush.bf16.msra.mxu0 %v788
        %804 = vmatpush.bf16.msra.mxu0 %v787
        %805 = vmatpush.bf16.msra.mxu0 %v786
        %806 = vmatpush.bf16.msra.mxu0 %v785
        %807 = vmatpush.bf16.msra.mxu0 %v784
        %808 = vmatmul.bf16.gmra.mxu0 %v716
        %v809 = vpop.f32.mrf.mxu0
        %v810 = vadd.f32 %v750, %v809
        %v811 = vpop.f32.mrf.mxu0
        %v812 = vadd.f32 %v750, %v811
        %813 = vmatmul.bf16.gmra.mxu0 %v717
        %v814 = vpop.f32.mrf.mxu0
        %v815 = vadd.f32 %v750, %v814
        %v816 = vpop.f32.mrf.mxu0
        %v817 = vadd.f32 %v750, %v816
        %818 = vmatmul.bf16.gmra.mxu0 %v718
        %v819 = vpop.f32.mrf.mxu0
        %v820 = vadd.f32 %v750, %v819
        %v821 = vpop.f32.mrf.mxu0
        %v822 = vadd.f32 %v750, %v821
        %823 = vmatmul.bf16.gmra.mxu0 %v719
        %v824 = vpop.f32.mrf.mxu0
        %v825 = vadd.f32 %v750, %v824
        %v826 = vpop.f32.mrf.mxu0
        %v827 = vadd.f32 %v750, %v826
        %828 = vmatmul.bf16.gmra.mxu0 %v720
        %v829 = vpop.f32.mrf.mxu0
        %v830 = vadd.f32 %v750, %v829
        %v831 = vpop.f32.mrf.mxu0
        %v832 = vadd.f32 %v750, %v831
        %833 = vmatmul.bf16.gmra.mxu0 %v721
        %v834 = vpop.f32.mrf.mxu0
        %v835 = vadd.f32 %v750, %v834
        %v836 = vpop.f32.mrf.mxu0
        %v837 = vadd.f32 %v750, %v836
        %838 = vmatmul.bf16.gmra.mxu0 %v722
        %v839 = vpop.f32.mrf.mxu0
        %v840 = vadd.f32 %v750, %v839
        %v841 = vpop.f32.mrf.mxu0
        %v842 = vadd.f32 %v750, %v841
        %843 = vmatmul.bf16.gmra.mxu0 %v723
        %v844 = vpop.f32.mrf.mxu0
        %v845 = vadd.f32 %v750, %v844
        %v846 = vpop.f32.mrf.mxu0
        %v847 = vadd.f32 %v750, %v846
        %848 = vmatmul.bf16.gmra.mxu0 %v724
        %v849 = vpop.f32.mrf.mxu0
        %v850 = vadd.f32 %v750, %v849
        %v851 = vpop.f32.mrf.mxu0
        %v852 = vadd.f32 %v750, %v851
        %853 = vmatmul.bf16.gmra.mxu0 %v725
        %v854 = vpop.f32.mrf.mxu0
        %v855 = vadd.f32 %v750, %v854
        %v856 = vpop.f32.mrf.mxu0
        %v857 = vadd.f32 %v750, %v856
        %858 = vmatmul.bf16.gmra.mxu0 %v726
        %v859 = vpop.f32.mrf.mxu0
        %v860 = vadd.f32 %v750, %v859
        %v861 = vpop.f32.mrf.mxu0
        %v862 = vadd.f32 %v750, %v861
        %863 = vmatmul.bf16.gmra.mxu0 %v727
        %v864 = vpop.f32.mrf.mxu0
        %v865 = vadd.f32 %v750, %v864
        %v866 = vpop.f32.mrf.mxu0
        %v867 = vadd.f32 %v750, %v866
        %868 = vmatmul.bf16.gmra.mxu0 %v728
        %v869 = vpop.f32.mrf.mxu0
        %v870 = vadd.f32 %v750, %v869
        %v871 = vpop.f32.mrf.mxu0
        %v872 = vadd.f32 %v750, %v871
        %873 = vmatmul.bf16.gmra.mxu0 %v729
        %v874 = vpop.f32.mrf.mxu0
        %v875 = vadd.f32 %v750, %v874
        %v876 = vpop.f32.mrf.mxu0
        %v877 = vadd.f32 %v750, %v876
        %878 = vmatmul.bf16.gmra.mxu0 %v730
        %v879 = vpop.f32.mrf.mxu0
        %v880 = vadd.f32 %v750, %v879
        %v881 = vpop.f32.mrf.mxu0
        %v882 = vadd.f32 %v750, %v881
        %883 = vmatmul.bf16.gmra.mxu0 %v731
        %v884 = vpop.f32.mrf.mxu0
        %v885 = vadd.f32 %v750, %v884
        %v886 = vpop.f32.mrf.mxu0
        %v887 = vadd.f32 %v750, %v886
        %888 = vdwg.mxu0
        %v889 = vmax.f32 %v810, 0.0
        %v890 = vmax.f32 %v812, 0.0
        %v891 = vmax.f32 %v815, 0.0
        %v892 = vmax.f32 %v817, 0.0
        %v893 = vmax.f32 %v820, 0.0
        %v894 = vmax.f32 %v822, 0.0
        %v895 = vmax.f32 %v825, 0.0
        %v896 = vmax.f32 %v827, 0.0
        %v897 = vmax.f32 %v830, 0.0
        %v898 = vmax.f32 %v832, 0.0
        %v899 = vmax.f32 %v835, 0.0
        %v900 = vmax.f32 %v837, 0.0
        %v901 = vmax.f32 %v840, 0.0
        %v902 = vmax.f32 %v842, 0.0
        %v903 = vmax.f32 %v845, 0.0
        %v904 = vmax.f32 %v847, 0.0
        %v905 = vmax.f32 %v850, 0.0
        %v906 = vmax.f32 %v852, 0.0
        %v907 = vmax.f32 %v855, 0.0
        %v908 = vmax.f32 %v857, 0.0
        %v909 = vmax.f32 %v860, 0.0
        %v910 = vmax.f32 %v862, 0.0
        %v911 = vmax.f32 %v865, 0.0
        %v912 = vmax.f32 %v867, 0.0
        %v913 = vmax.f32 %v870, 0.0
        %v914 = vmax.f32 %v872, 0.0
        %v915 = vmax.f32 %v875, 0.0
        %v916 = vmax.f32 %v877, 0.0
        %v917 = vmax.f32 %v880, 0.0
        %v918 = vmax.f32 %v882, 0.0
        %v919 = vmax.f32 %v885, 0.0
        %v920 = vmax.f32 %v887, 0.0
        %v921 = vmax.f32 %v889, %v890
        %v922 = vrot.slane %v921, 4
        %v923 = vmax.f32 %v921, %v922
        %v924 = vrot.slane %v923, 2
        %v925 = vmax.f32 %v923, %v924
        %v926 = vrot.slane %v925, 1
        %v927 = vmax.f32 %v925, %v926
        %v928 = vmax.f32 %v891, %v892
        %v929 = vrot.slane %v928, 4
        %v930 = vmax.f32 %v928, %v929
        %v931 = vrot.slane %v930, 2
        %v932 = vmax.f32 %v930, %v931
        %v933 = vrot.slane %v932, 1
        %v934 = vmax.f32 %v932, %v933
        %v935 = vmax.f32 %v893, %v894
        %v936 = vrot.slane %v935, 4
        %v937 = vmax.f32 %v935, %v936
        %v938 = vrot.slane %v937, 2
        %v939 = vmax.f32 %v937, %v938
        %v940 = vrot.slane %v939, 1
        %v941 = vmax.f32 %v939, %v940
        %v942 = vmax.f32 %v895, %v896
        %v943 = vrot.slane %v942, 4
        %v944 = vmax.f32 %v942, %v943
        %v945 = vrot.slane %v944, 2
        %v946 = vmax.f32 %v944, %v945
        %v947 = vrot.slane %v946, 1
        %v948 = vmax.f32 %v946, %v947
        %v949 = vmax.f32 %v897, %v898
        %v950 = vrot.slane %v949, 4
        %v951 = vmax.f32 %v949, %v950
        %v952 = vrot.slane %v951, 2
        %v953 = vmax.f32 %v951, %v952
        %v954 = vrot.slane %v953, 1
        %v955 = vmax.f32 %v953, %v954
        %v956 = vmax.f32 %v899, %v900
        %v957 = vrot.slane %v956, 4
        %v958 = vmax.f32 %v956, %v957
        %v959 = vrot.slane %v958, 2
        %v960 = vmax.f32 %v958, %v959
        %v961 = vrot.slane %v960, 1
        %v962 = vmax.f32 %v960, %v961
        %v963 = vmax.f32 %v901, %v902
        %v964 = vrot.slane %v963, 4
        %v965 = vmax.f32 %v963, %v964
        %v966 = vrot.slane %v965, 2
        %v967 = vmax.f32 %v965, %v966
        %v968 = vrot.slane %v967, 1
        %v969 = vmax.f32 %v967, %v968
        %v970 = vmax.f32 %v903, %v904
        %v971 = vrot.slane %v970, 4
        %v972 = vmax.f32 %v970, %v971
        %v973 = vrot.slane %v972, 2
        %v974 = vmax.f32 %v972, %v973
        %v975 = vrot.slane %v974, 1
        %v976 = vmax.f32 %v974, %v975
        %v977 = vmax.f32 %v905, %v906
        %v978 = vrot.slane %v977, 4
        %v979 = vmax.f32 %v977, %v978
        %v980 = vrot.slane %v979, 2
        %v981 = vmax.f32 %v979, %v980
        %v982 = vrot.slane %v981, 1
        %v983 = vmax.f32 %v981, %v982
        %v984 = vmax.f32 %v907, %v908
        %v985 = vrot.slane %v984, 4
        %v986 = vmax.f32 %v984, %v985
        %v987 = vrot.slane %v986, 2
        %v988 = vmax.f32 %v986, %v987
        %v989 = vrot.slane %v988, 1
        %v990 = vmax.f32 %v988, %v989
        %v991 = vmax.f32 %v909, %v910
        %v992 = vrot.slane %v991, 4
        %v993 = vmax.f32 %v991, %v992
        %v994 = vrot.slane %v993, 2
        %v995 = vmax.f32 %v993, %v994
        %v996 = vrot.slane %v995, 1
        %v997 = vmax.f32 %v995, %v996
        %v998 = vmax.f32 %v911, %v912
        %v999 = vrot.slane %v998, 4
        %v1000 = vmax.f32 %v998, %v999
        %v1001 = vrot.slane %v1000, 2
        %v1002 = vmax.f32 %v1000, %v1001
        %v1003 = vrot.slane %v1002, 1
        %v1004 = vmax.f32 %v1002, %v1003
        %v1005 = vmax.f32 %v913, %v914
        %v1006 = vrot.slane %v1005, 4
        %v1007 = vmax.f32 %v1005, %v1006
        %v1008 = vrot.slane %v1007, 2
        %v1009 = vmax.f32 %v1007, %v1008
        %v1010 = vrot.slane %v1009, 1
        %v1011 = vmax.f32 %v1009, %v1010
        %v1012 = vmax.f32 %v915, %v916
        %v1013 = vrot.slane %v1012, 4
        %v1014 = vmax.f32 %v1012, %v1013
        %v1015 = vrot.slane %v1014, 2
        %v1016 = vmax.f32 %v1014, %v1015
        %v1017 = vrot.slane %v1016, 1
        %v1018 = vmax.f32 %v1016, %v1017
        %v1019 = vmax.f32 %v917, %v918
        %v1020 = vrot.slane %v1019, 4
        %v1021 = vmax.f32 %v1019, %v1020
        %v1022 = vrot.slane %v1021, 2
        %v1023 = vmax.f32 %v1021, %v1022
        %v1024 = vrot.slane %v1023, 1
        %v1025 = vmax.f32 %v1023, %v1024
        %v1026 = vmax.f32 %v919, %v920
        %v1027 = vrot.slane %v1026, 4
        %v1028 = vmax.f32 %v1026, %v1027
        %v1029 = vrot.slane %v1028, 2
        %v1030 = vmax.f32 %v1028, %v1029
        %v1031 = vrot.slane %v1030, 1
        %v1032 = vmax.f32 %v1030, %v1031
        %v1033 = vpack.c.bf16 %v927, %v927
        %v1034 = vpack.c.bf16 %v934, %v934
        %v1035 = vpack.c.bf16 %v941, %v941
        %v1036 = vpack.c.bf16 %v948, %v948
        %v1037 = vpack.c.bf16 %v955, %v955
        %v1038 = vpack.c.bf16 %v962, %v962
        %v1039 = vpack.c.bf16 %v969, %v969
        %v1040 = vpack.c.bf16 %v976, %v976
        %v1041 = vpack.c.bf16 %v983, %v983
        %v1042 = vpack.c.bf16 %v990, %v990
        %v1043 = vpack.c.bf16 %v997, %v997
        %v1044 = vpack.c.bf16 %v1004, %v1004
        %v1045 = vpack.c.bf16 %v1011, %v1011
        %v1046 = vpack.c.bf16 %v1018, %v1018
        %v1047 = vpack.c.bf16 %v1025, %v1025
        %v1048 = vpack.c.bf16 %v1032, %v1032
        %v1065 = vunpack.c.l.b16 %v1033
        %v1066 = vunpack.c.l.b16 %v1034
        %v1067 = vunpack.c.l.b16 %v1035
        %v1068 = vunpack.c.l.b16 %v1036
        %v1069 = vunpack.c.l.b16 %v1037
        %v1070 = vunpack.c.l.b16 %v1038
        %v1071 = vunpack.c.l.b16 %v1039
        %v1072 = vunpack.c.l.b16 %v1040
        %v1073 = vunpack.c.l.b16 %v1041
        %v1074 = vunpack.c.l.b16 %v1042
        %v1075 = vunpack.c.l.b16 %v1043
        %v1076 = vunpack.c.l.b16 %v1044
        %v1077 = vunpack.c.l.b16 %v1045
        %v1078 = vunpack.c.l.b16 %v1046
        %v1079 = vunpack.c.l.b16 %v1047
        %v1080 = vunpack.c.l.b16 %v1048
        %vm1081 = vcmask 1041409
        %v1082 = vsel %vm1081, %v1066, %v1065
        %vm1083 = vcmask 1042434
        %v1084 = vsel %vm1083, %v1067, %v1082
        %vm1085 = vcmask 1043459
        %v1086 = vsel %vm1085, %v1068, %v1084
        %vm1087 = vcmask 1044484
        %v1088 = vsel %vm1087, %v1069, %v1086
        %vm1089 = vcmask 1045509
        %v1090 = vsel %vm1089, %v1070, %v1088
        %vm1091 = vcmask 1046534
        %v1092 = vsel %vm1091, %v1071, %v1090
        %vm1093 = vcmask 1047559
        %v1094 = vsel %vm1093, %v1072, %v1092
        %v1095 = vsel %vm1081, %v1074, %v1073
        %v1096 = vsel %vm1083, %v1075, %v1095
        %v1097 = vsel %vm1085, %v1076, %v1096
        %v1098 = vsel %vm1087, %v1077, %v1097
        %v1099 = vsel %vm1089, %v1078, %v1098
        %v1100 = vsel %vm1091, %v1079, %v1099
        %v1101 = vsel %vm1093, %v1080, %v1100
        %v1102 = vpack.c.b16 %v1094, %v1094
        %v1103 = vpack.c.b16 %v1101, %v1101
        %1106 = vst [vmem:[%s261] sm:$0xf] %v1102
        %1107 = vst [vmem:[%s261 + $0x4] sm:$0xf] %v1103
        %s1108 = sand.u32 %s164, 1
        %s1109 = scalar_lea.sflag [#allocation3], %s1108
        %s1110 = sand.u32 %s164, 1
        %s1111 = smul.addr %s1110, 8
        %s1112 = scalar_lea.vmem [#allocation2], %s1111
        // Predicated region
        $region45: #{tpu_custom_call.1} parent=43 // pred_check
          %p1113 = pneg %p174
        $region46: #{tpu_custom_call.1} parent=43 // pred_check_branch
          %1115 = sbr.rel (%p1113) target = $region48
        $region47: #{tpu_custom_call.1} parent=43 // pred_region
          %s1116 = smul.u32 2, %s20
          %1118 = vsyncadd %s1109, 0
          %s1119 = smul.addr %s1116, 4
          %s1120 = scalar_lea.hbm %s6, %s1119
          %s1121 = sshll.u32 %s1112, 4
          %s1122 = int_to_ptr.vmem [resolvable:$true] %s1121
          %s1123 = sshll.u32 %s1120, 4
          %s1124 = int_to_ptr.hbm [resolvable:$true] %s1123
          %1129 = dma.vmem_to_hbm [thread:$0]  %s1122, 128, %s1124, %s1109, 64, 64, 4
        $region48: #{tpu_custom_call.1} parent=43 // pred_fallthru
          _
      $region44: #{tpu_custom_call.1} parent=5 // pred_fallthru
        _
      %p1130 = scmp.le.s32.totalorder 2, %s15
      // Predicated region
      $region49: #{tpu_custom_call.1} parent=5 // pred_check
        %p1131 = pneg %p1130
      $region50: #{tpu_custom_call.1} parent=5 // pred_check_branch
        %1133 = sbr.rel (%p1131) target = $region52
      $region51: #{tpu_custom_call.1} parent=5 // pred_region
        %s1134 = ssub.s32 %s15, 2
        // Predicated region
        $region53: #{tpu_custom_call.1} parent=51 // pred_check
          %p1135 = pneg %p180
        $region54: #{tpu_custom_call.1} parent=51 // pred_check_branch
          %1137 = sbr.rel (%p1135) target = $region56
        $region55: #{tpu_custom_call.1} parent=51 // pred_region
          %s1138 = sand.u32 %s165, 1
          %s1139 = scalar_lea.sflag [#allocation3], %s1138
          %s1140 = sand.u32 %s165, 1
          %s1141 = smul.addr %s1140, 8
          %s1142 = scalar_lea.vmem [#allocation2], %s1141
          %1144 = dma.done %s1139, 128
        $region56: #{tpu_custom_call.1} parent=51 // pred_fallthru
          _
      $region52: #{tpu_custom_call.1} parent=5 // pred_fallthru
        _
    $region6: #{tpu_custom_call.1} parent=1 // loop_footer
      %s19 = sadd.s32 1, %s15
    $region7: #{tpu_custom_call.1} parent=1 // loop_footer_branch
      %14 = sbr.rel target = $region3
    $region8: #{tpu_custom_call.1} parent=1 // loop_exit
      _
    %1145 = vsyncpa [#allocation3], 1
    %s1146 = scalar_lea.sflag [#allocation3], 1
    %1147 = vsyncpa %s1146, 1

</llo_original>
